<compile_context>
chip_gen: v7x
topology: tpu7x:2x2x1
jax: 0.10.0
libtpu: 0.0.40
codegen_flags: <defaults>
</compile_context>

<pallas_src>
import math
import functools
import numpy as np
import jax
import jax.numpy as jnp
from jax.experimental import pallas as pl
from jax.experimental.pallas import tpu as pltpu


# ----------------------------- schedule (glue) ------------------------------
def make_linear_schedule(n_timestep=100, linear_start=1e-4, linear_end=2e-2,
                         p2_loss_weight_gamma=0.0, p2_loss_weight_k=1.0):
    betas = np.linspace(linear_start, linear_end, n_timestep, dtype=np.float64)
    alphas = 1.0 - betas
    alphas_cumprod = np.cumprod(alphas, axis=0)
    return dict(
        num_timesteps=n_timestep,
        sqrt_alphas_cumprod=jnp.asarray(np.sqrt(alphas_cumprod), jnp.float32),
        sqrt_one_minus_alphas_cumprod=jnp.asarray(
            np.sqrt(1.0 - alphas_cumprod), jnp.float32),
        p2_loss_weight=jnp.asarray(
            (p2_loss_weight_k + alphas_cumprod / (1.0 - alphas_cumprod))
            ** (-p2_loss_weight_gamma), jnp.float32),
    )


# --------------------------- synthetic model params -------------------------
def init_params(key, C, Cc, H, T):
    k1, k2, k3, k4 = jax.random.split(key, 4)
    W1c = jax.random.normal(k1, (H, Cc), jnp.float32) * 0.2
    W1x = jax.random.normal(k2, (H, C), jnp.float32) * 0.2
    W2 = jax.random.normal(k3, (C, H), jnp.float32) * 0.2
    b1 = jnp.zeros((H, 1), jnp.float32)
    b2 = jnp.zeros((C, 1), jnp.float32)
    tt = np.arange(T, dtype=np.float32)[:, None]
    freqs = np.exp(-np.linspace(0.0, math.log(1000.0), H // 2,
                                dtype=np.float32))[None, :]
    temb_table = np.concatenate([np.sin(tt * freqs), np.cos(tt * freqs)], axis=1)
    temb_table = jnp.asarray(temb_table, jnp.float32)           # (T, H)
    temb_table = temb_table @ (jax.random.normal(k4, (H, H), jnp.float32) * 0.1)
    return dict(W1c=W1c, W1x=W1x, W2=W2, b1=b1, b2=b2, temb_table=temb_table)


# ------------------------------- Pallas kernel -------------------------------
def diffusion_loss_kernel(pb_ref, cond_ref, x_ref, noise_ref,       # (8+H,B) | (ch, TN)
                          w1c_ref, w1x_ref, w2_ref, b2_ref,         # weights (VMEM-resident)
                          out_ref,                                  # (1, TN) weighted col SSE
                          *, L):
    TN = out_ref.shape[-1]
    B = pb_ref.shape[-1]
    j = pl.program_id(0)

    # Broadcast the tiny per-batch table (a, s, p2w, temb+b1) to per-column vectors
    # with one small one-hot MXU dot (exact: exactly one 1.0 per column).  This
    # replaces the old wrapper-side (H, B*L) repeated-temb HBM stream.
    gcol = j * TN + jax.lax.broadcasted_iota(jnp.int32, (B, TN), 1)   # global column id
    brow = jax.lax.broadcasted_iota(jnp.int32, (B, TN), 0)            # candidate batch id
    sel = ((gcol >= brow * L) & (gcol < (brow + 1) * L)).astype(jnp.float32)   # (B, TN)
    bcast = jnp.dot(pb_ref[...], sel, preferred_element_type=jnp.float32)      # (8+H, TN)
    a_row, s_row, p2_row = bcast[0:1], bcast[1:2], bcast[2:3]
    temb = bcast[8:]                                                  # (H, TN), 8-aligned slice

    nz = noise_ref[...].astype(jnp.float32)
    # q-sample: x_noisy = sqrt(acp[t_b]) * x0 + sqrt(1 - acp[t_b]) * noise
    x_noisy = a_row * x_ref[...].astype(jnp.float32) + s_row * nz

    # model(cat([cond, x_noisy], channel), time=t): two accumulated MXU dots
    # (no concat copy, no channel zero-padding); b1 is folded into temb.
    w1c, w1x = w1c_ref[...], w1x_ref[...]
    h = (jnp.dot(w1c, cond_ref[...].astype(w1c.dtype), preferred_element_type=jnp.float32)
         + jnp.dot(w1x, x_noisy.astype(w1x.dtype), preferred_element_type=jnp.float32)
         + temb)
    h = jnp.maximum(h, 0.0)
    w2 = w2_ref[...]
    pred = jnp.dot(w2, h.astype(w2.dtype), preferred_element_type=jnp.float32) + b2_ref[...]

    # per-column p2-weighted sum of squared errors (lane-dense output); the
    # batch-mean / (B*C*L) normalization happens once in the wrapper.
    diff = nz - pred
    out_ref[...] = p2_row * jnp.sum(diff * diff, axis=0, keepdims=True)


def _pick_lane_tile(BL, bytes_per_col, budget=12 << 20):
    """Lane-tile size: biggest that fits the streamed-block budget, with >=2 grid
    blocks when possible (v7x megacore).  budget is conservative vs v5e's 16 MiB
    default scoped VMEM; larger tiles on v6e just raise vmem_limit_bytes below."""
    if BL % 128 != 0:
        return BL                       # tiny/demo path: single (masked-store) tile
    cands = [c for c in (4096, 2048, 1024, 512, 256, 128) if BL % c == 0]
    for c in cands:
        if c <= BL // 2 and 2 * c * bytes_per_col <= budget:
            return c
    return cands[-1]                    # == 128


def diffusion_forward(x, condition_x, params, sched, key,
                      matmul_dtype=jnp.float32, stream_dtype=jnp.float32):
    # matmul_dtype / stream_dtype = jnp.bfloat16 halve the weight / HBM-stream bytes
    # on any generation (v5e/v6e/v7x MXU are all bf16-native); f32 accumulation is
    # kept via preferred_element_type and elementwise math stays f32 in-kernel.
    # Defaults are f32 to stay bit-faithful to the reference in the demo check.
    B, C, L = x.shape
    Cc = condition_x.shape[1]
    H = params["W1x"].shape[0]
    BL = B * L

    kt, kn = jax.random.split(key)
    t = jax.random.randint(kt, (B,), 0, sched["num_timesteps"])
    # noise is generated directly in lane-major (C, B, L); reshape to (C, BL) is free.
    noise_cbl = jax.random.normal(kn, (C, B, L), jnp.float32)

    a = sched["sqrt_alphas_cumprod"][t]                      # (B,)
    s = sched["sqrt_one_minus_alphas_cumprod"][t]            # (B,)
    p2w = sched["p2_loss_weight"][t]                         # (B,)

    # per-batch table (VMEM-resident, constant index_map):
    #   rows 0..2 = a, s, p2w ; rows 3..7 = pad ; rows 8.. = temb(t)^T + b1 (b1 folded)
    pb = jnp.zeros((8 + H, B), jnp.float32)
    pb = pb.at[0, :].set(a).at[1, :].set(s).at[2, :].set(p2w)
    pb = pb.at[8:, :].set(params["temb_table"][t].T + params["b1"])

    # lane-major streams (ch, B*L), b-major columns.  Production callers should
    # supply x / cond already in (C, B, L) layout to avoid this transpose pass.
    xw = jnp.transpose(x, (1, 0, 2)).reshape(C, BL).astype(stream_dtype)
    condw = jnp.transpose(condition_x, (1, 0, 2)).reshape(Cc, BL).astype(stream_dtype)
    nzw = noise_cbl.reshape(C, BL).astype(stream_dtype)

    W1c = params["W1c"].astype(matmul_dtype)
    W1x = params["W1x"].astype(matmul_dtype)
    W2 = params["W2"].astype(matmul_dtype)
    b2 = params["b2"]

    itemsize = np.dtype(stream_dtype).itemsize
    bytes_per_col = (Cc + 2 * C) * itemsize + 4              # streamed in + f32 out
    TN = _pick_lane_tile(BL, bytes_per_col)
    grid = (BL // TN,)

    # compiler params: only raise the scoped-VMEM limit when the blocks need it.
    w_bytes = 4 * (pb.size + W1c.size + W1x.size + W2.size + b2.size)
    need = (2 * TN * bytes_per_col                           # double-buffered column blocks
            + 2 * w_bytes                                    # invariant blocks (worst case)
            + 4 * TN * (8 + 2 * H + 2 * C))                  # in-kernel intermediates
    cp = dict(dimension_semantics=("parallel",))
    if need > (14 << 20):                                    # above v5e's 16 MiB default
        cp["vmem_limit_bytes"] = int(min(2 * need, 60 << 20))  # stay under v7x's 64 MiB

    flops = int(2 * BL * (H * (Cc + C) + C * H + (8 + H) * B) + 12 * BL * C)
    bytes_accessed = int((Cc + 2 * C) * BL * itemsize + 4 * BL + 4 * pb.size
                         + np.dtype(matmul_dtype).itemsize * (W1c.size + W1x.size + W2.size)
                         + 4 * b2.size)

    def col_spec(ch):
        return pl.BlockSpec((ch, TN), lambda j: (0, j))

    def full_spec(shape):
        # constant index_map -> block stays resident across the grid (no re-DMA).
        # (Could also be single-buffered via pipeline_mode=pl.Buffered(1); negligible here.)
        return pl.BlockSpec(shape, lambda j: (0, 0))

    out = pl.pallas_call(
        functools.partial(diffusion_loss_kernel, L=L),
        out_shape=jax.ShapeDtypeStruct((1, BL), jnp.float32),
        grid_spec=pltpu.PrefetchScalarGridSpec(
            num_scalar_prefetch=0,
            grid=grid,
            in_specs=[
                full_spec((8 + H, B)),                       # per-batch coef/temb table
                col_spec(Cc), col_spec(C), col_spec(C),      # cond, x, noise streams
                full_spec((H, Cc)), full_spec((H, C)),       # W1c, W1x
                full_spec((C, H)), full_spec((C, 1)),        # W2, b2
            ],
            out_specs=col_spec(1),
        ),
        compiler_params=pltpu.CompilerParams(**cp),
        cost_estimate=pl.CostEstimate(flops=flops, transcendentals=0,
                                      bytes_accessed=bytes_accessed),
    )(pb, condw, xw, nzw, W1c, W1x, W2, b2)

    loss = jnp.sum(out) / (B * C * L)
    aux = dict(t=t, noise=jnp.transpose(noise_cbl, (1, 0, 2)))   # (B, C, L) for reference
    return loss, aux


# ------------------------------ JAX reference --------------------------------
def reference_forward(x, condition_x, params, sched, t, noise):
    hi = jax.lax.Precision.HIGHEST
    a = sched["sqrt_alphas_cumprod"][t][:, None, None]
    s = sched["sqrt_one_minus_alphas_cumprod"][t][:, None, None]
    p2w = sched["p2_loss_weight"][t]
    x_noisy = a * x + s * noise
    temb = params["temb_table"][t][:, :, None]
    h = (jnp.einsum("hc,bcl->bhl", params["W1c"], condition_x, precision=hi)
         + jnp.einsum("hc,bcl->bhl", params["W1x"], x_noisy, precision=hi)
         + params["b1"][None] + temb)
    h = jnp.maximum(h, 0.0)
    pred = jnp.einsum("oh,bhl->bol", params["W2"], h, precision=hi) + params["b2"][None]
    loss = (noise - pred) ** 2                       # L2, reduction='none'
    loss = loss.reshape(x.shape[0], -1)              # 'b ... -> b (...)'
    loss = loss * p2w[:, None]                       # p2 weighting
    return loss.mean()


if __name__ == "__main__":
    # TODO(synk): the PyTorch `seeds` path (per-sample torch.manual_seed noise),
    # classes/cond_scale branch, l1/huber loss variants, and generate() sampling
    # loop are not modelled; this implements the default l2 p_losses path.
    def run_case(B, C, Cc, L, H, T, gamma, seed):
        key = jax.random.PRNGKey(seed)
        k_x, k_c, k_p, k_fwd = jax.random.split(key, 4)
        x = jax.random.normal(k_x, (B, C, L), jnp.float32)           # x_start, NCL
        condition_x = jax.random.normal(k_c, (B, Cc, L), jnp.float32)
        sched = make_linear_schedule(n_timestep=T, p2_loss_weight_gamma=gamma)
        params = init_params(k_p, C, Cc, H, T)
        loss, aux = diffusion_forward(x, condition_x, params, sched, k_fwd)
        loss = jax.block_until_ready(loss)
        ref = reference_forward(x, condition_x, params, sched, aux["t"], aux["noise"])
        if not bool(jnp.allclose(loss, ref, rtol=2e-3, atol=1e-5)):
            raise AssertionError(f"mismatch: kernel={float(loss)} ref={float(ref)}")

    # small/demo shape: single sub-128-lane (masked-store) tile, grid=(1,)
    run_case(B=2, C=4, Cc=4, L=16, H=32, T=100, gamma=0.0, seed=0)
    # production-tiling path: BL=512 -> TN=256, grid=(2,), non-trivial p2 weighting
    run_case(B=4, C=4, Cc=4, L=128, H=32, T=100, gamma=0.5, seed=1)

    print("KERNEL_OK")
</pallas_src>

<mosaic_0001>
module attributes {stable_mosaic.version = 11 : i64} {
  func.func @diffusion_loss_kernel(%arg0: i32, %arg1: memref<40x2xf32, #tpu.memory_space<vmem>>, %arg2: memref<4x32xf32, #tpu.memory_space<vmem>>, %arg3: memref<4x32xf32, #tpu.memory_space<vmem>>, %arg4: memref<4x32xf32, #tpu.memory_space<vmem>>, %arg5: memref<32x4xf32, #tpu.memory_space<vmem>>, %arg6: memref<32x4xf32, #tpu.memory_space<vmem>>, %arg7: memref<4x32xf32, #tpu.memory_space<vmem>>, %arg8: memref<4x1xf32, #tpu.memory_space<vmem>>, %arg9: memref<1x32xf32, #tpu.memory_space<vmem>>) attributes {dimension_semantics = [#tpu.dimension_semantics<parallel>], iteration_bounds = array<i64: 1>, scalar_prefetch = 0 : i64, scratch_operands = 0 : i64, tpu.core_type = #tpu.core_type<tc>, window_params = [{pipeline_mode = #tpu.pipeline_mode<synchronous>, transform_indices = @transform_0, window_bounds = array<i64: 40, 2>}, {transform_indices = @transform_1, window_bounds = array<i64: 4, 32>}, {transform_indices = @transform_2, window_bounds = array<i64: 4, 32>}, {transform_indices = @transform_3, window_bounds = array<i64: 4, 32>}, {pipeline_mode = #tpu.pipeline_mode<synchronous>, transform_indices = @transform_4, window_bounds = array<i64: 32, 4>}, {pipeline_mode = #tpu.pipeline_mode<synchronous>, transform_indices = @transform_5, window_bounds = array<i64: 32, 4>}, {pipeline_mode = #tpu.pipeline_mode<synchronous>, transform_indices = @transform_6, window_bounds = array<i64: 4, 32>}, {pipeline_mode = #tpu.pipeline_mode<synchronous>, transform_indices = @transform_7, window_bounds = array<i64: 4, 1>}, {transform_indices = @transform_8, window_bounds = array<i64: 1, 32>}]} {
    %c32_i32 = arith.constant 32 : i32
    %0 = arith.muli %arg0, %c32_i32 : i32
    %1 = tpu.iota {dimensions = array<i32: 1>} : vector<2x32xi32>
    %2 = vector.broadcast %0 : i32 to vector<2x32xi32>
    %3 = arith.addi %2, %1 : vector<2x32xi32>
    %4 = tpu.iota {dimensions = array<i32: 0>} : vector<2x32xi32>
    %c16_i32 = arith.constant 16 : i32
    %5 = vector.broadcast %c16_i32 : i32 to vector<2x32xi32>
    %6 = arith.muli %4, %5 : vector<2x32xi32>
    %7 = arith.cmpi sge, %3, %6 : vector<2x32xi32>
    %c1_i32 = arith.constant 1 : i32
    %8 = vector.broadcast %c1_i32 : i32 to vector<2x32xi32>
    %9 = arith.addi %4, %8 : vector<2x32xi32>
    %c16_i32_0 = arith.constant 16 : i32
    %10 = vector.broadcast %c16_i32_0 : i32 to vector<2x32xi32>
    %11 = arith.muli %9, %10 : vector<2x32xi32>
    %12 = arith.cmpi slt, %3, %11 : vector<2x32xi32>
    %13 = arith.andi %7, %12 : vector<2x32xi1>
    %14 = arith.extui %13 : vector<2x32xi1> to vector<2x32xi32>
    %15 = arith.sitofp %14 : vector<2x32xi32> to vector<2x32xf32>
    %c0 = arith.constant 0 : index
    %c0_1 = arith.constant 0 : index
    %16 = vector.load %arg1[%c0, %c0_1] : memref<40x2xf32, #tpu.memory_space<vmem>>, vector<40x2xf32>
    %cst = arith.constant dense<0.000000e+00> : vector<40x32xf32>
    %17 = tpu.matmul %16, %15, %cst {dimension_numbers = #tpu.dot_dimension_numbers<[1], [0], [0], [1], [0, 0, 1, 1], [], []>} : vector<40x2xf32>, vector<2x32xf32>, vector<40x32xf32> -> vector<40x32xf32>
    %18 = vector.extract_strided_slice %17 {offsets = [0, 0], sizes = [1, 32], strides = [1, 1]} : vector<40x32xf32> to vector<1x32xf32>
    %19 = vector.extract_strided_slice %17 {offsets = [1, 0], sizes = [1, 32], strides = [1, 1]} : vector<40x32xf32> to vector<1x32xf32>
    %20 = vector.extract_strided_slice %17 {offsets = [2, 0], sizes = [1, 32], strides = [1, 1]} : vector<40x32xf32> to vector<1x32xf32>
    %21 = vector.extract_strided_slice %17 {offsets = [8, 0], sizes = [32, 32], strides = [1, 1]} : vector<40x32xf32> to vector<32x32xf32>
    %c0_2 = arith.constant 0 : index
    %c0_3 = arith.constant 0 : index
    %22 = vector.load %arg4[%c0_2, %c0_3] : memref<4x32xf32, #tpu.memory_space<vmem>>, vector<4x32xf32>
    %c0_4 = arith.constant 0 : index
    %c0_5 = arith.constant 0 : index
    %23 = vector.load %arg3[%c0_4, %c0_5] : memref<4x32xf32, #tpu.memory_space<vmem>>, vector<4x32xf32>
    %24 = vector.broadcast %18 : vector<1x32xf32> to vector<4x32xf32>
    %25 = arith.mulf %24, %23 : vector<4x32xf32>
    %26 = vector.broadcast %19 : vector<1x32xf32> to vector<4x32xf32>
    %27 = arith.mulf %26, %22 : vector<4x32xf32>
    %28 = arith.addf %25, %27 : vector<4x32xf32>
    %c0_6 = arith.constant 0 : index
    %c0_7 = arith.constant 0 : index
    %29 = vector.load %arg5[%c0_6, %c0_7] : memref<32x4xf32, #tpu.memory_space<vmem>>, vector<32x4xf32>
    %c0_8 = arith.constant 0 : index
    %c0_9 = arith.constant 0 : index
    %30 = vector.load %arg6[%c0_8, %c0_9] : memref<32x4xf32, #tpu.memory_space<vmem>>, vector<32x4xf32>
    %c0_10 = arith.constant 0 : index
    %c0_11 = arith.constant 0 : index
    %31 = vector.load %arg2[%c0_10, %c0_11] : memref<4x32xf32, #tpu.memory_space<vmem>>, vector<4x32xf32>
    %cst_12 = arith.constant dense<0.000000e+00> : vector<32x32xf32>
    %32 = tpu.matmul %29, %31, %cst_12 {dimension_numbers = #tpu.dot_dimension_numbers<[1], [0], [0], [1], [0, 0, 1, 1], [], []>} : vector<32x4xf32>, vector<4x32xf32>, vector<32x32xf32> -> vector<32x32xf32>
    %cst_13 = arith.constant dense<0.000000e+00> : vector<32x32xf32>
    %33 = tpu.matmul %30, %28, %cst_13 {dimension_numbers = #tpu.dot_dimension_numbers<[1], [0], [0], [1], [0, 0, 1, 1], [], []>} : vector<32x4xf32>, vector<4x32xf32>, vector<32x32xf32> -> vector<32x32xf32>
    %34 = arith.addf %32, %33 : vector<32x32xf32>
    %35 = arith.addf %34, %21 : vector<32x32xf32>
    %cst_14 = arith.constant 0.000000e+00 : f32
    %36 = vector.broadcast %cst_14 : f32 to vector<32x32xf32>
    %37 = arith.maximumf %35, %36 : vector<32x32xf32>
    %c0_15 = arith.constant 0 : index
    %c0_16 = arith.constant 0 : index
    %38 = vector.load %arg7[%c0_15, %c0_16] : memref<4x32xf32, #tpu.memory_space<vmem>>, vector<4x32xf32>
    %cst_17 = arith.constant dense<0.000000e+00> : vector<4x32xf32>
    %39 = tpu.matmul %38, %37, %cst_17 {dimension_numbers = #tpu.dot_dimension_numbers<[1], [0], [0], [1], [0, 0, 1, 1], [], []>} : vector<4x32xf32>, vector<32x32xf32>, vector<4x32xf32> -> vector<4x32xf32>
    %c0_18 = arith.constant 0 : index
    %c0_19 = arith.constant 0 : index
    %40 = vector.load %arg8[%c0_18, %c0_19] : memref<4x1xf32, #tpu.memory_space<vmem>>, vector<4x1xf32>
    %41 = vector.broadcast %40 : vector<4x1xf32> to vector<4x32xf32>
    %42 = arith.addf %39, %41 : vector<4x32xf32>
    %43 = arith.subf %22, %42 : vector<4x32xf32>
    %44 = arith.mulf %43, %43 : vector<4x32xf32>
    %cst_20 = arith.constant dense<0.000000e+00> : vector<32xf32>
    %45 = vector.multi_reduction <add>, %44, %cst_20 [0] : vector<4x32xf32> to vector<32xf32>
    %46 = vector.shape_cast %45 : vector<32xf32> to vector<1x32xf32>
    %47 = arith.mulf %20, %46 : vector<1x32xf32>
    %c0_21 = arith.constant 0 : index
    %c0_22 = arith.constant 0 : index
    %48 = vector.load %arg9[%c0_21, %c0_22] : memref<1x32xf32, #tpu.memory_space<vmem>>, vector<1x32xf32>
    tpu.vector_store %arg9[%c0_21, %c0_22], %47 {strides = array<i32>} : memref<1x32xf32, #tpu.memory_space<vmem>>, vector<1x32xf32>,
    return
  }
  func.func @transform_0(%arg0: i32) -> (i32, i32) {
    %c0_i32 = arith.constant 0 : i32
    %c0_i32_0 = arith.constant 0 : i32
    %c0_i32_1 = arith.constant 0 : i32
    return %c0_i32, %c0_i32_0 : i32, i32
  }
  func.func @transform_1(%arg0: i32) -> (i32, i32) {
    %c0_i32 = arith.constant 0 : i32
    %c0_i32_0 = arith.constant 0 : i32
    return %c0_i32, %arg0 : i32, i32
  }
  func.func @transform_2(%arg0: i32) -> (i32, i32) {
    %c0_i32 = arith.constant 0 : i32
    %c0_i32_0 = arith.constant 0 : i32
    return %c0_i32, %arg0 : i32, i32
  }
  func.func @transform_3(%arg0: i32) -> (i32, i32) {
    %c0_i32 = arith.constant 0 : i32
    %c0_i32_0 = arith.constant 0 : i32
    return %c0_i32, %arg0 : i32, i32
  }
  func.func @transform_4(%arg0: i32) -> (i32, i32) {
    %c0_i32 = arith.constant 0 : i32
    %c0_i32_0 = arith.constant 0 : i32
    %c0_i32_1 = arith.constant 0 : i32
    return %c0_i32, %c0_i32_0 : i32, i32
  }
  func.func @transform_5(%arg0: i32) -> (i32, i32) {
    %c0_i32 = arith.constant 0 : i32
    %c0_i32_0 = arith.constant 0 : i32
    %c0_i32_1 = arith.constant 0 : i32
    return %c0_i32, %c0_i32_0 : i32, i32
  }
  func.func @transform_6(%arg0: i32) -> (i32, i32) {
    %c0_i32 = arith.constant 0 : i32
    %c0_i32_0 = arith.constant 0 : i32
    %c0_i32_1 = arith.constant 0 : i32
    return %c0_i32, %c0_i32_0 : i32, i32
  }
  func.func @transform_7(%arg0: i32) -> (i32, i32) {
    %c0_i32 = arith.constant 0 : i32
    %c0_i32_0 = arith.constant 0 : i32
    %c0_i32_1 = arith.constant 0 : i32
    return %c0_i32, %c0_i32_0 : i32, i32
  }
  func.func @transform_8(%arg0: i32) -> (i32, i32) {
    %c0_i32 = arith.constant 0 : i32
    %c0_i32_0 = arith.constant 0 : i32
    return %c0_i32, %arg0 : i32, i32
  }
}

</mosaic_0001>

<llo_original>
// kernel: tpu_custom_call.1
$region0: #{tpu_custom_call.1}
  #allocation0 [shape = 'u32[]', space=smem, size = 0x4, offset = 0x4, fixed_abs, tag = 'smem constant byte address 0x4 - core index']
  #allocation1 [shape = 'u32[144,128]{1,0:T(1,128)}', space=vmem, size = 0x12000, scoped, tag = 'internal scratch']
  %s0 = inlined_call_operand.vmem [shape: f32[40,2], index: 0, kind: input, shape index: {}]
  %s1 = inlined_call_operand.vmem [shape: f32[4,32], index: 1, kind: input, shape index: {}]
  %s2 = inlined_call_operand.vmem [shape: f32[4,32], index: 2, kind: input, shape index: {}]
  %s3 = inlined_call_operand.vmem [shape: f32[4,32], index: 3, kind: input, shape index: {}]
  %s4 = inlined_call_operand.vmem [shape: f32[32,4], index: 4, kind: input, shape index: {}]
  %s5 = inlined_call_operand.vmem [shape: f32[32,4], index: 5, kind: input, shape index: {}]
  %s6 = inlined_call_operand.vmem [shape: f32[4,32], index: 6, kind: input, shape index: {}]
  %s7 = inlined_call_operand.vmem [shape: f32[4,1], index: 7, kind: input, shape index: {}]
  %s8 = inlined_call_operand.hbm [shape: f32[1,32], index: 8, kind: output, shape index: {}]
  %s9 = sld [smem:[#allocation0]]
  $region42: #{tpu_custom_call.1} parent=0
    _
  %s11 = ssub.s32 1, %s9
  %s12 = scalar_select 0, %s11, %s9
  $region1: #{tpu_custom_call.1} parent=0
    #allocation2 [shape = 'u8[512]{0}', space=vmem, size = 0x400, scoped, tag = 'output window, operand 0, single buffered']
    #allocation3 [shape = 's32[1]{0}', space=sflag, size = 0x4, scoped, tag = 'scoped memory for tpu_custom_call.1']
    %13 = vsyncpa [#allocation3], 0
    // Predicated region
    $region2: #{tpu_custom_call.1} parent=1 // pred_check
      _
    $region3: #{tpu_custom_call.1} parent=1 // pred_check_branch
      %15 = sbr.rel (0) target = $region5
    $region4: #{tpu_custom_call.1} parent=1 // pred_region
      _
    $region5: #{tpu_custom_call.1} parent=1 // pred_fallthru
      _
    // Predicated region
    $region6: #{tpu_custom_call.1} parent=1 // pred_check
      _
    $region7: #{tpu_custom_call.1} parent=1 // pred_check_branch
      %17 = sbr.rel (0) target = $region9
    $region8: #{tpu_custom_call.1} parent=1 // pred_region
      _
    $region9: #{tpu_custom_call.1} parent=1 // pred_fallthru
      _
    // Predicated region
    $region10: #{tpu_custom_call.1} parent=1 // pred_check
      _
    $region11: #{tpu_custom_call.1} parent=1 // pred_check_branch
      %19 = sbr.rel (0) target = $region13
    $region12: #{tpu_custom_call.1} parent=1 // pred_region
      _
    $region13: #{tpu_custom_call.1} parent=1 // pred_fallthru
      _
    // Predicated region
    $region14: #{tpu_custom_call.1} parent=1 // pred_check
      _
    $region15: #{tpu_custom_call.1} parent=1 // pred_check_branch
      %21 = sbr.rel (0) target = $region17
    $region16: #{tpu_custom_call.1} parent=1 // pred_region
      _
    $region17: #{tpu_custom_call.1} parent=1 // pred_fallthru
      _
    // Predicated region
    $region18: #{tpu_custom_call.1} parent=1 // pred_check
      _
    $region19: #{tpu_custom_call.1} parent=1 // pred_check_branch
      %23 = sbr.rel (0) target = $region21
    $region20: #{tpu_custom_call.1} parent=1 // pred_region
      _
    $region21: #{tpu_custom_call.1} parent=1 // pred_fallthru
      _
    // Predicated region
    $region22: #{tpu_custom_call.1} parent=1 // pred_check
      _
    $region23: #{tpu_custom_call.1} parent=1 // pred_check_branch
      %25 = sbr.rel (0) target = $region25
    $region24: #{tpu_custom_call.1} parent=1 // pred_region
      _
    $region25: #{tpu_custom_call.1} parent=1 // pred_fallthru
      _
    // Predicated region
    $region26: #{tpu_custom_call.1} parent=1 // pred_check
      _
    $region27: #{tpu_custom_call.1} parent=1 // pred_check_branch
      %27 = sbr.rel (0) target = $region29
    $region28: #{tpu_custom_call.1} parent=1 // pred_region
      _
    $region29: #{tpu_custom_call.1} parent=1 // pred_fallthru
      _
    // Predicated region
    $region30: #{tpu_custom_call.1} parent=1 // pred_check
      _
    $region31: #{tpu_custom_call.1} parent=1 // pred_check_branch
      %29 = sbr.rel (0) target = $region33
    $region32: #{tpu_custom_call.1} parent=1 // pred_region
      _
    $region33: #{tpu_custom_call.1} parent=1 // pred_fallthru
      _
    %s30 = smul.u32 0, 32
    %v31 = vlaneseq
    %v32 = vand.u32 %v31, 127
    %v33 = vstv %s30
    %v34 = vadd.s32 %v33, %v32
    %v35 = vlaneseq
    %v36 = vshrl.u32 %v35, 7
    %v37 = vmul.u32 %v36, 16
    %vm38 = vcmp.ge.s32.totalorder %v34, %v37
    %v39 = vadd.s32 %v36, 1
    %v40 = vmul.u32 %v39, 16
    %vm41 = vcmp.lt.s32.totalorder %v34, %v40
    %vm42 = vmand %vm38, %vm41
    %v43 = vsel %vm42, 1, 0
    %v44 = vcvt.s32.f32 %v43
    %v45 = vld [vmem:[%s0] sm:$0xff]
    %v46 = vld [vmem:[%s0 + $0x8] sm:$0xff]
    %v47 = vld [vmem:[%s0 + $0x10] sm:$0xff]
    %v48 = vld [vmem:[%s0 + $0x18] sm:$0xff]
    %v49 = vld [vmem:[%s0 + $0x20] sm:$0xff]
    %vm50 = vcmask 15360
    %v52 = vsel %vm50, %v45, 0
    %v55 = vsel %vm50, %v46, 0
    %v58 = vsel %vm50, %v47, 0
    %v61 = vsel %vm50, %v48, 0
    %v64 = vsel %vm50, %v49, 0
    %vm66 = vcmask 1041408
    %v68 = vsel %vm66, %v44, 0
    %70 = vmatprep.subr.mxu0 0.0
    %71 = vmatpush1.msra.mxu0 %v68
    %72 = vmatprep.subr.mxu0 0.0
    %73 = vmatpush1.msra.mxu0 0.0
    %74 = vmatprep.subr.mxu0 0.0
    %75 = vmatpush1.msra.mxu0 0.0
    %76 = vmatprep.subr.mxu0 0.0
    %77 = vmatpush1.msra.mxu0 0.0
    %78 = vmatprep.subr.mxu0 0.0
    %79 = vmatpush1.msra.mxu0 0.0
    %80 = vmatprep.subr.mxu0 0.0
    %81 = vmatpush1.msra.mxu0 0.0
    %82 = vmatprep.subr.mxu0 0.0
    %83 = vmatpush1.msra.mxu0 0.0
    %84 = vmatprep.subr.mxu0 0.0
    %85 = vmatpush1.msra.mxu0 0.0
    %86 = vmatprep.subr.mxu0 0.0
    %87 = vmatpush1.msra.mxu0 0.0
    %88 = vmatprep.subr.mxu0 0.0
    %89 = vmatpush1.msra.mxu0 0.0
    %90 = vmatprep.subr.mxu0 0.0
    %91 = vmatpush1.msra.mxu0 0.0
    %92 = vmatprep.subr.mxu0 0.0
    %93 = vmatpush1.msra.mxu0 0.0
    %94 = vmatprep.subr.mxu0 0.0
    %95 = vmatpush1.msra.mxu0 0.0
    %96 = vmatprep.subr.mxu0 0.0
    %97 = vmatpush1.msra.mxu0 0.0
    %98 = vmatprep.subr.mxu0 0.0
    %99 = vmatpush1.msra.mxu0 0.0
    %100 = vmatprep.subr.mxu0 0.0
    %101 = vmatpush1.msra.mxu0 0.0
    %102 = vmatprep.subr.mxu0 0.0
    %103 = vmatpush1.msra.mxu0 0.0
    %104 = vmatprep.subr.mxu0 0.0
    %105 = vmatpush1.msra.mxu0 0.0
    %106 = vmatprep.subr.mxu0 0.0
    %107 = vmatpush1.msra.mxu0 0.0
    %108 = vmatprep.subr.mxu0 0.0
    %109 = vmatpush1.msra.mxu0 0.0
    %110 = vmatprep.subr.mxu0 0.0
    %111 = vmatpush1.msra.mxu0 0.0
    %112 = vmatprep.subr.mxu0 0.0
    %113 = vmatpush1.msra.mxu0 0.0
    %114 = vmatprep.subr.mxu0 0.0
    %115 = vmatpush1.msra.mxu0 0.0
    %116 = vmatprep.subr.mxu0 0.0
    %117 = vmatpush1.msra.mxu0 0.0
    %118 = vmatprep.subr.mxu0 0.0
    %119 = vmatpush1.msra.mxu0 0.0
    %120 = vmatprep.subr.mxu0 0.0
    %121 = vmatpush1.msra.mxu0 0.0
    %122 = vmatprep.subr.mxu0 0.0
    %123 = vmatpush1.msra.mxu0 0.0
    %124 = vmatprep.subr.mxu0 0.0
    %125 = vmatpush1.msra.mxu0 0.0
    %126 = vmatprep.subr.mxu0 0.0
    %127 = vmatpush1.msra.mxu0 0.0
    %128 = vmatprep.subr.mxu0 0.0
    %129 = vmatpush1.msra.mxu0 0.0
    %130 = vmatprep.subr.mxu0 0.0
    %131 = vmatpush1.msra.mxu0 0.0
    %132 = vmatprep.subr.mxu0 0.0
    %133 = vmatpush1.msra.mxu0 0.0
    %134 = vmatprep.mubr.f32.mxu0 0.0
    %135 = vmatmul.mubr.f32.gmra.mrb[0].mxu0 %v52
    %v136 = vpop.f32.mrb[0].mxu0
    %v137 = vadd.f32 0.0, %v136
    %v138 = vpop.f32.mrb[0].mxu0
    %139 = vmatprep.mubr.f32.mxu0 0.0
    %140 = vmatmul.mubr.f32.gmra.mrb[0].mxu0 %v55
    %v141 = vpop.f32.mrb[0].mxu0
    %v142 = vadd.f32 0.0, %v141
    %v143 = vpop.f32.mrb[0].mxu0
    %144 = vmatprep.mubr.f32.mxu0 0.0
    %145 = vmatmul.mubr.f32.gmra.mrb[0].mxu0 %v58
    %v146 = vpop.f32.mrb[0].mxu0
    %v147 = vadd.f32 0.0, %v146
    %v148 = vpop.f32.mrb[0].mxu0
    %149 = vmatprep.mubr.f32.mxu0 0.0
    %150 = vmatmul.mubr.f32.gmra.mrb[0].mxu0 %v61
    %v151 = vpop.f32.mrb[0].mxu0
    %v152 = vadd.f32 0.0, %v151
    %v153 = vpop.f32.mrb[0].mxu0
    %154 = vmatprep.mubr.f32.mxu0 0.0
    %155 = vmatmul.mubr.f32.gmra.mrb[0].mxu0 %v64
    %v156 = vpop.f32.mrb[0].mxu0
    %v157 = vadd.f32 0.0, %v156
    %v158 = vpop.f32.mrb[0].mxu0
    %159 = vdwg.mxu0
    %v160 = vld [vmem:[%s3] sm:$0xf]
    %v161 = vld [vmem:[%s2] sm:$0xf]
    %v162 = vlaneseq
    %v163 = vshrl.u32 %v162, 7
    %v164 = vsub.s32 0, %v163
    %v165 = vrot.slane %v137, %v164
    %v166 = vmul.f32 %v165, %v161
    %v167 = vlaneseq
    %v168 = vshrl.u32 %v167, 7
    %v169 = vsub.s32 1, %v168
    %v170 = vrot.slane %v137, %v169
    %v171 = vmul.f32 %v170, %v160
    %v172 = vadd.f32 %v166, %v171
    %v173 = vld [vmem:[%s4] sm:$0xff]
    %v174 = vld [vmem:[%s4 + $0x8] sm:$0xff]
    %v175 = vld [vmem:[%s4 + $0x10] sm:$0xff]
    %v176 = vld [vmem:[%s4 + $0x18] sm:$0xff]
    %v177 = vld [vmem:[%s5] sm:$0xff]
    %v178 = vld [vmem:[%s5 + $0x8] sm:$0xff]
    %v179 = vld [vmem:[%s5 + $0x10] sm:$0xff]
    %v180 = vld [vmem:[%s5 + $0x18] sm:$0xff]
    %v181 = vld [vmem:[%s1] sm:$0xf]
    %vm182 = vcmask 31744
    %v184 = vsel %vm182, %v177, 0
    %v187 = vsel %vm182, %v178, 0
    %v190 = vsel %vm182, %v179, 0
    %v193 = vsel %vm182, %v180, 0
    %vm195 = vcmask 1043456
    %v197 = vsel %vm195, %v172, 0
    %199 = vmatprep.subr.mxu0 0.0
    %200 = vmatpush1.msra.mxu0 %v197
    %201 = vmatprep.subr.mxu0 0.0
    %202 = vmatpush1.msra.mxu0 0.0
    %203 = vmatprep.subr.mxu0 0.0
    %204 = vmatpush1.msra.mxu0 0.0
    %205 = vmatprep.subr.mxu0 0.0
    %206 = vmatpush1.msra.mxu0 0.0
    %207 = vmatprep.subr.mxu0 0.0
    %208 = vmatpush1.msra.mxu0 0.0
    %209 = vmatprep.subr.mxu0 0.0
    %210 = vmatpush1.msra.mxu0 0.0
    %211 = vmatprep.subr.mxu0 0.0
    %212 = vmatpush1.msra.mxu0 0.0
    %213 = vmatprep.subr.mxu0 0.0
    %214 = vmatpush1.msra.mxu0 0.0
    %215 = vmatprep.subr.mxu0 0.0
    %216 = vmatpush1.msra.mxu0 0.0
    %217 = vmatprep.subr.mxu0 0.0
    %218 = vmatpush1.msra.mxu0 0.0
    %219 = vmatprep.subr.mxu0 0.0
    %220 = vmatpush1.msra.mxu0 0.0
    %221 = vmatprep.subr.mxu0 0.0
    %222 = vmatpush1.msra.mxu0 0.0
    %223 = vmatprep.subr.mxu0 0.0
    %224 = vmatpush1.msra.mxu0 0.0
    %225 = vmatprep.subr.mxu0 0.0
    %226 = vmatpush1.msra.mxu0 0.0
    %227 = vmatprep.subr.mxu0 0.0
    %228 = vmatpush1.msra.mxu0 0.0
    %229 = vmatprep.subr.mxu0 0.0
    %230 = vmatpush1.msra.mxu0 0.0
    %231 = vmatprep.subr.mxu0 0.0
    %232 = vmatpush1.msra.mxu0 0.0
    %233 = vmatprep.subr.mxu0 0.0
    %234 = vmatpush1.msra.mxu0 0.0
    %235 = vmatprep.subr.mxu0 0.0
    %236 = vmatpush1.msra.mxu0 0.0
    %237 = vmatprep.subr.mxu0 0.0
    %238 = vmatpush1.msra.mxu0 0.0
    %239 = vmatprep.subr.mxu0 0.0
    %240 = vmatpush1.msra.mxu0 0.0
    %241 = vmatprep.subr.mxu0 0.0
    %242 = vmatpush1.msra.mxu0 0.0
    %243 = vmatprep.subr.mxu0 0.0
    %244 = vmatpush1.msra.mxu0 0.0
    %245 = vmatprep.subr.mxu0 0.0
    %246 = vmatpush1.msra.mxu0 0.0
    %247 = vmatprep.subr.mxu0 0.0
    %248 = vmatpush1.msra.mxu0 0.0
    %249 = vmatprep.subr.mxu0 0.0
    %250 = vmatpush1.msra.mxu0 0.0
    %251 = vmatprep.subr.mxu0 0.0
    %252 = vmatpush1.msra.mxu0 0.0
    %253 = vmatprep.subr.mxu0 0.0
    %254 = vmatpush1.msra.mxu0 0.0
    %255 = vmatprep.subr.mxu0 0.0
    %256 = vmatpush1.msra.mxu0 0.0
    %257 = vmatprep.subr.mxu0 0.0
    %258 = vmatpush1.msra.mxu0 0.0
    %259 = vmatprep.subr.mxu0 0.0
    %260 = vmatpush1.msra.mxu0 0.0
    %261 = vmatprep.subr.mxu0 0.0
    %262 = vmatpush1.msra.mxu0 0.0
    %263 = vmatprep.mubr.f32.mxu0 0.0
    %264 = vmatmul.mubr.f32.gmra.mrb[0].mxu0 %v184
    %v265 = vpop.f32.mrb[0].mxu0
    %v266 = vadd.f32 0.0, %v265
    %v267 = vpop.f32.mrb[0].mxu0
    %268 = vmatprep.mubr.f32.mxu0 0.0
    %269 = vmatmul.mubr.f32.gmra.mrb[0].mxu0 %v187
    %v270 = vpop.f32.mrb[0].mxu0
    %v271 = vadd.f32 0.0, %v270
    %v272 = vpop.f32.mrb[0].mxu0
    %273 = vmatprep.mubr.f32.mxu0 0.0
    %274 = vmatmul.mubr.f32.gmra.mrb[0].mxu0 %v190
    %v275 = vpop.f32.mrb[0].mxu0
    %v276 = vadd.f32 0.0, %v275
    %v277 = vpop.f32.mrb[0].mxu0
    %278 = vmatprep.mubr.f32.mxu0 0.0
    %279 = vmatmul.mubr.f32.gmra.mrb[0].mxu0 %v193
    %v280 = vpop.f32.mrb[0].mxu0
    %v281 = vadd.f32 0.0, %v280
    %v282 = vpop.f32.mrb[0].mxu0
    %283 = vdwg.mxu0
    %v285 = vsel %vm182, %v173, 0
    %v288 = vsel %vm182, %v174, 0
    %v291 = vsel %vm182, %v175, 0
    %v294 = vsel %vm182, %v176, 0
    %v297 = vsel %vm195, %v181, 0
    %299 = vmatprep.subr.mxu0 0.0
    %300 = vmatpush1.msra.mxu0 %v297
    %301 = vmatprep.subr.mxu0 0.0
    %302 = vmatpush1.msra.mxu0 0.0
    %303 = vmatprep.subr.mxu0 0.0
    %304 = vmatpush1.msra.mxu0 0.0
    %305 = vmatprep.subr.mxu0 0.0
    %306 = vmatpush1.msra.mxu0 0.0
    %307 = vmatprep.subr.mxu0 0.0
    %308 = vmatpush1.msra.mxu0 0.0
    %309 = vmatprep.subr.mxu0 0.0
    %310 = vmatpush1.msra.mxu0 0.0
    %311 = vmatprep.subr.mxu0 0.0
    %312 = vmatpush1.msra.mxu0 0.0
    %313 = vmatprep.subr.mxu0 0.0
    %314 = vmatpush1.msra.mxu0 0.0
    %315 = vmatprep.subr.mxu0 0.0
    %316 = vmatpush1.msra.mxu0 0.0
    %317 = vmatprep.subr.mxu0 0.0
    %318 = vmatpush1.msra.mxu0 0.0
    %319 = vmatprep.subr.mxu0 0.0
    %320 = vmatpush1.msra.mxu0 0.0
    %321 = vmatprep.subr.mxu0 0.0
    %322 = vmatpush1.msra.mxu0 0.0
    %323 = vmatprep.subr.mxu0 0.0
    %324 = vmatpush1.msra.mxu0 0.0
    %325 = vmatprep.subr.mxu0 0.0
    %326 = vmatpush1.msra.mxu0 0.0
    %327 = vmatprep.subr.mxu0 0.0
    %328 = vmatpush1.msra.mxu0 0.0
    %329 = vmatprep.subr.mxu0 0.0
    %330 = vmatpush1.msra.mxu0 0.0
    %331 = vmatprep.subr.mxu0 0.0
    %332 = vmatpush1.msra.mxu0 0.0
    %333 = vmatprep.subr.mxu0 0.0
    %334 = vmatpush1.msra.mxu0 0.0
    %335 = vmatprep.subr.mxu0 0.0
    %336 = vmatpush1.msra.mxu0 0.0
    %337 = vmatprep.subr.mxu0 0.0
    %338 = vmatpush1.msra.mxu0 0.0
    %339 = vmatprep.subr.mxu0 0.0
    %340 = vmatpush1.msra.mxu0 0.0
    %341 = vmatprep.subr.mxu0 0.0
    %342 = vmatpush1.msra.mxu0 0.0
    %343 = vmatprep.subr.mxu0 0.0
    %344 = vmatpush1.msra.mxu0 0.0
    %345 = vmatprep.subr.mxu0 0.0
    %346 = vmatpush1.msra.mxu0 0.0
    %347 = vmatprep.subr.mxu0 0.0
    %348 = vmatpush1.msra.mxu0 0.0
    %349 = vmatprep.subr.mxu0 0.0
    %350 = vmatpush1.msra.mxu0 0.0
    %351 = vmatprep.subr.mxu0 0.0
    %352 = vmatpush1.msra.mxu0 0.0
    %353 = vmatprep.subr.mxu0 0.0
    %354 = vmatpush1.msra.mxu0 0.0
    %355 = vmatprep.subr.mxu0 0.0
    %356 = vmatpush1.msra.mxu0 0.0
    %357 = vmatprep.subr.mxu0 0.0
    %358 = vmatpush1.msra.mxu0 0.0
    %359 = vmatprep.subr.mxu0 0.0
    %360 = vmatpush1.msra.mxu0 0.0
    %361 = vmatprep.subr.mxu0 0.0
    %362 = vmatpush1.msra.mxu0 0.0
    %363 = vmatprep.mubr.f32.mxu0 0.0
    %364 = vmatmul.mubr.f32.gmra.mrb[0].mxu0 %v285
    %v365 = vpop.f32.mrb[0].mxu0
    %v366 = vadd.f32 %v266, %v365
    %v367 = vpop.f32.mrb[0].mxu0
    %368 = vmatprep.mubr.f32.mxu0 0.0
    %369 = vmatmul.mubr.f32.gmra.mrb[0].mxu0 %v288
    %v370 = vpop.f32.mrb[0].mxu0
    %v371 = vadd.f32 %v271, %v370
    %v372 = vpop.f32.mrb[0].mxu0
    %373 = vmatprep.mubr.f32.mxu0 0.0
    %374 = vmatmul.mubr.f32.gmra.mrb[0].mxu0 %v291
    %v375 = vpop.f32.mrb[0].mxu0
    %v376 = vadd.f32 %v276, %v375
    %v377 = vpop.f32.mrb[0].mxu0
    %378 = vmatprep.mubr.f32.mxu0 0.0
    %379 = vmatmul.mubr.f32.gmra.mrb[0].mxu0 %v294
    %v380 = vpop.f32.mrb[0].mxu0
    %v381 = vadd.f32 %v281, %v380
    %v382 = vpop.f32.mrb[0].mxu0
    %383 = vdwg.mxu0
    %v384 = vadd.f32 %v366, %v142
    %v385 = vadd.f32 %v371, %v147
    %v386 = vadd.f32 %v376, %v152
    %v387 = vadd.f32 %v381, %v157
    %v388 = vmax.f32 %v384, 0.0
    %v389 = vmax.f32 %v385, 0.0
    %v390 = vmax.f32 %v386, 0.0
    %v391 = vmax.f32 %v387, 0.0
    %v392 = vld [vmem:[%s6] sm:$0xf]
    %v393 = vld [vmem:[%s7] sm:$0xf]
    %395 = vset.pattern.permute.xlu0 0
    %396 = vperm.xlu0 %395, %v393
    %v397 = vpop.permute.xlu0 %396
    %vm399 = vcmask 261120
    %v401 = vsel %vm399, %v392, 0
    %403 = vmatprep.subr.mxu0 0.0
    %404 = vmatpush1.msra.mxu0 %v388
    %405 = vmatprep.subr.mxu0 0.0
    %406 = vmatpush1.msra.mxu0 %v389
    %407 = vmatprep.subr.mxu0 0.0
    %408 = vmatpush1.msra.mxu0 %v390
    %409 = vmatprep.subr.mxu0 0.0
    %410 = vmatpush1.msra.mxu0 %v391
    %411 = vmatprep.subr.mxu0 0.0
    %412 = vmatpush1.msra.mxu0 0.0
    %413 = vmatprep.subr.mxu0 0.0
    %414 = vmatpush1.msra.mxu0 0.0
    %415 = vmatprep.subr.mxu0 0.0
    %416 = vmatpush1.msra.mxu0 0.0
    %417 = vmatprep.subr.mxu0 0.0
    %418 = vmatpush1.msra.mxu0 0.0
    %419 = vmatprep.subr.mxu0 0.0
    %420 = vmatpush1.msra.mxu0 0.0
    %421 = vmatprep.subr.mxu0 0.0
    %422 = vmatpush1.msra.mxu0 0.0
    %423 = vmatprep.subr.mxu0 0.0
    %424 = vmatpush1.msra.mxu0 0.0
    %425 = vmatprep.subr.mxu0 0.0
    %426 = vmatpush1.msra.mxu0 0.0
    %427 = vmatprep.subr.mxu0 0.0
    %428 = vmatpush1.msra.mxu0 0.0
    %429 = vmatprep.subr.mxu0 0.0
    %430 = vmatpush1.msra.mxu0 0.0
    %431 = vmatprep.subr.mxu0 0.0
    %432 = vmatpush1.msra.mxu0 0.0
    %433 = vmatprep.subr.mxu0 0.0
    %434 = vmatpush1.msra.mxu0 0.0
    %435 = vmatprep.subr.mxu0 0.0
    %436 = vmatpush1.msra.mxu0 0.0
    %437 = vmatprep.subr.mxu0 0.0
    %438 = vmatpush1.msra.mxu0 0.0
    %439 = vmatprep.subr.mxu0 0.0
    %440 = vmatpush1.msra.mxu0 0.0
    %441 = vmatprep.subr.mxu0 0.0
    %442 = vmatpush1.msra.mxu0 0.0
    %443 = vmatprep.subr.mxu0 0.0
    %444 = vmatpush1.msra.mxu0 0.0
    %445 = vmatprep.subr.mxu0 0.0
    %446 = vmatpush1.msra.mxu0 0.0
    %447 = vmatprep.subr.mxu0 0.0
    %448 = vmatpush1.msra.mxu0 0.0
    %449 = vmatprep.subr.mxu0 0.0
    %450 = vmatpush1.msra.mxu0 0.0
    %451 = vmatprep.subr.mxu0 0.0
    %452 = vmatpush1.msra.mxu0 0.0
    %453 = vmatprep.subr.mxu0 0.0
    %454 = vmatpush1.msra.mxu0 0.0
    %455 = vmatprep.subr.mxu0 0.0
    %456 = vmatpush1.msra.mxu0 0.0
    %457 = vmatprep.subr.mxu0 0.0
    %458 = vmatpush1.msra.mxu0 0.0
    %459 = vmatprep.subr.mxu0 0.0
    %460 = vmatpush1.msra.mxu0 0.0
    %461 = vmatprep.subr.mxu0 0.0
    %462 = vmatpush1.msra.mxu0 0.0
    %463 = vmatprep.subr.mxu0 0.0
    %464 = vmatpush1.msra.mxu0 0.0
    %465 = vmatprep.subr.mxu0 0.0
    %466 = vmatpush1.msra.mxu0 0.0
    %467 = vmatprep.mubr.f32.mxu0 0.0
    %468 = vmatmul.mubr.f32.gmra.mrb[0].mxu0 %v401
    %v469 = vpop.f32.mrb[0].mxu0
    %v470 = vadd.f32 %v397, %v469
    %v471 = vpop.f32.mrb[0].mxu0
    %472 = vdwg.mxu0
    %v473 = vsub.f32 %v160, %v470
    %v474 = vmul.f32 %v473, %v473
    %vm475 = vcmask 257024
    %v476 = vsel %vm475, %v474, 0.0
    %v477 = vrot.slane %v476, 4
    %v478 = vadd.f32 %v476, %v477
    %v479 = vrot.slane %v478, 2
    %v480 = vadd.f32 %v478, %v479
    %v481 = vrot.slane %v480, 1
    %v482 = vadd.f32 %v480, %v481
    %v483 = vmul.f32 %v137, %v482
    %vm484 = vcmask 256002
    %485 = vst.msk [vmem:[#allocation2 - $0x2] sm:$0x4] %vm484, %v483
    // Predicated region
    $region34: #{tpu_custom_call.1} parent=1 // pred_check
      _
    $region35: #{tpu_custom_call.1} parent=1 // pred_check_branch
      %487 = sbr.rel (0) target = $region37
    $region36: #{tpu_custom_call.1} parent=1 // pred_region
      %s489 = ssub.s32 16, 16
      %490 = vsyncadd [#allocation3], %s489
      %s492 = sshll.u32 [#allocation2], 4
      %s493 = int_to_ptr.vmem [resolvable:$true] %s492
      %495 = dma.vmem_to_hbm [thread:$0]  %s493, 16, %s8, [#allocation3]
    $region37: #{tpu_custom_call.1} parent=1 // pred_fallthru
      _
    // Predicated region
    $region38: #{tpu_custom_call.1} parent=1 // pred_check
      _
    $region39: #{tpu_custom_call.1} parent=1 // pred_check_branch
      %497 = sbr.rel (0) target = $region41
    $region40: #{tpu_custom_call.1} parent=1 // pred_region
      %498 = dma.done [#allocation3], 16
    $region41: #{tpu_custom_call.1} parent=1 // pred_fallthru
      _
    %499 = vsyncpa [#allocation3], 1

</llo_original>
